<compile_context>
chip_gen: v6e
topology: v6e:2x2x1
jax: 0.10.0
libtpu: 0.0.40
codegen_flags: <defaults>
</compile_context>

<pallas_src>
import math
import functools

import jax
import jax.numpy as jnp
from jax.experimental import pallas as pl
from jax.experimental.pallas import tpu as pltpu


# ----------------------------------------------------------------------------
# Helpers
# ----------------------------------------------------------------------------
def _pick_tile(dim, candidates):
    for t in candidates:
        if t <= dim and dim % t == 0:
            return t
    return dim


_INT8_MXU_OK = None


def _int8_mxu_supported():
    """int8 x int8 -> int32 MXU path: native on v5/v6; v7x (fp8 MXU) / older gens use bf16."""
    global _INT8_MXU_OK
    if _INT8_MXU_OK is not None:
        return _INT8_MXU_OK
    try:
        kind = jax.devices()[0].device_kind.lower()
    except Exception:
        kind = ""
    if ("v5" not in kind) and ("v6" not in kind):
        _INT8_MXU_OK = False
        return _INT8_MXU_OK
    # Tiny probe: confirm the int8 matmul actually lowers on this chip/jax version.
    try:
        def _probe(x_ref, w_ref, o_ref):
            o_ref[...] = jnp.dot(x_ref[...], w_ref[...],
                                 preferred_element_type=jnp.int32)
        x = jnp.ones((8, 128), jnp.int8)
        w = jnp.ones((128, 128), jnp.int8)
        out = pl.pallas_call(
            _probe, out_shape=jax.ShapeDtypeStruct((8, 128), jnp.int32))(x, w)
        jax.block_until_ready(out)
        _INT8_MXU_OK = True
    except Exception:
        _INT8_MXU_OK = False
    return _INT8_MXU_OK


# ----------------------------------------------------------------------------
# Tiled W4A8 linear:  out = (x_int8 @ w_int4) * (input_scale * w_scale[n]) + bias[n]
# Weights are pre-transposed to (K, N) so the MXU sees a standard (tm,tk)x(tk,tn) tile.
# ----------------------------------------------------------------------------
def w4a8_linear_kernel_bf16(x_ref, w_ref, alpha_ref, bias_ref, o_ref):
    # o_ref is resident across the k grid axis (same output block index) and is used
    # directly as the f32 accumulator -- no VMEM scratch copy.
    @pl.when(pl.program_id(2) == 0)
    def _init():
        o_ref[...] = jnp.zeros_like(o_ref)

    # |x| <= 128 and |w| <= 8 are exact in bf16; per-row dot stays within f32's 2^24
    # exact-integer window for K up to ~16K -> bit-identical to the int reference.
    x = x_ref[...].astype(jnp.bfloat16)
    w = w_ref[...].astype(jnp.bfloat16)
    o_ref[...] += jnp.dot(x, w, preferred_element_type=jnp.float32)

    @pl.when(pl.program_id(2) == pl.num_programs(2) - 1)
    def _finalize():
        o_ref[...] = o_ref[...] * alpha_ref[...] + bias_ref[...]


def w4a8_linear_kernel_int(x_ref, w_ref, alpha_ref, bias_ref, o_ref, acc_ref):
    # Native int8 MXU path (v5e/v6e): int32 accumulator scratch, no per-tile casts.
    @pl.when(pl.program_id(2) == 0)
    def _init():
        acc_ref[...] = jnp.zeros_like(acc_ref)

    acc_ref[...] += jnp.dot(x_ref[...], w_ref[...],
                            preferred_element_type=jnp.int32)

    @pl.when(pl.program_id(2) == pl.num_programs(2) - 1)
    def _finalize():
        o_ref[...] = acc_ref[...].astype(jnp.float32) * alpha_ref[...] + bias_ref[...]


def w4a8_linear(x_int8, w_t_int4, w_scale, bias, input_scale):
    """x_int8: (M, K) int8; w_t_int4: (K, N) int8 (values in [-8, 7]) -> (M, N) f32."""
    M, K = x_int8.shape
    N = w_t_int4.shape[1]
    alpha = (w_scale.astype(jnp.float32) * jnp.float32(input_scale)).reshape(1, N)
    bias2 = bias.astype(jnp.float32).reshape(1, N)

    # Tiles: larger K tiles amortize per-step pipeline overhead; footprint at max
    # tiles (256x256 out f32 + 256x2048 int8 x2 double-buffered) is ~3 MiB, well
    # under the 32 MiB scoped budget that is safe on every generation (v7x incl.).
    tm = _pick_tile(M, (256, 128, 64, 32, 16, 8))
    tn = _pick_tile(N, (256, 128))
    tk = _pick_tile(K, (2048, 1024, 512, 256, 128))
    grid = (M // tm, N // tn, K // tk)

    use_int = _int8_mxu_supported()
    if not use_int:
        # bf16 exact-integer window check (|x|<=128, |w|<=8).
        assert K <= 16384, "bf16 GEMM path exactness window exceeded; use int8 MXU path"
    kernel = w4a8_linear_kernel_int if use_int else w4a8_linear_kernel_bf16
    scratch = [pltpu.VMEM((tm, tn), jnp.int32)] if use_int else []

    return pl.pallas_call(
        kernel,
        grid=grid,
        in_specs=[
            pl.BlockSpec((tm, tk), lambda i, j, k: (i, k)),
            pl.BlockSpec((tk, tn), lambda i, j, k: (k, j)),
            pl.BlockSpec((1, tn), lambda i, j, k: (0, j)),
            pl.BlockSpec((1, tn), lambda i, j, k: (0, j)),
        ],
        out_specs=pl.BlockSpec((tm, tn), lambda i, j, k: (i, j)),
        out_shape=jax.ShapeDtypeStruct((M, N), jnp.float32),
        scratch_shapes=scratch,
        compiler_params=pltpu.CompilerParams(
            dimension_semantics=("parallel", "parallel", "arbitrary"),
            vmem_limit_bytes=32 * 1024 * 1024),
    )(x_int8, w_t_int4, alpha, bias2)


# ----------------------------------------------------------------------------
# Fused attention core, tiled over (batch, head, kv-tile) with online softmax.
#   RoPE -> int8 fake-quant (scales folded post-matmul) -> QK^T/sqrt(d) + mask
#   -> flash accumulation -> PV (bf16) -> int8 requant epilogue per head block.
# ----------------------------------------------------------------------------
def flash_attn_kernel(q_ref, k_ref, v_ref, cosq_ref, sinq_ref, cosk_ref, sink_ref,
                      mask_ref, *out_and_scratch,
                      q_scale, k_scale, v_scale, out_scale, head_dim, with_weights):
    if with_weights:
        o_ref, aw_ref, qi_sc, m_sc, l_sc, acc_sc = out_and_scratch
    else:
        o_ref, qi_sc, m_sc, l_sc, acc_sc = out_and_scratch
        aw_ref = None

    kv_i = pl.program_id(2)
    half = head_dim // 2
    d_idx = jax.lax.broadcasted_iota(jnp.int32, (1, head_dim), 1)
    sign = jnp.where(d_idx < half, -1.0, 1.0).astype(jnp.float32)
    neg_big = jnp.finfo(jnp.float32).min

    def rope(x, cos, sin):
        # rotate_half(x) = concat(-x2, x1) == roll(x, hd/2) with the first half negated.
        rot = pltpu.roll(x, shift=half, axis=1) * sign
        return x * cos + rot * sin

    @pl.when(kv_i == 0)
    def _init():
        # RoPE + fake-quant of q once per (batch, head); cached across kv tiles.
        q = q_ref[0, 0]                                     # (q_len, hd) f32
        qr = rope(q, cosq_ref[0], sinq_ref[0])
        qi = jnp.clip(jnp.round(qr / q_scale), -128.0, 127.0)
        qi_sc[...] = qi.astype(jnp.bfloat16)                # exact: integers <= 128
        m_sc[...] = jnp.full(m_sc.shape, neg_big, dtype=jnp.float32)
        l_sc[...] = jnp.zeros(l_sc.shape, dtype=jnp.float32)
        acc_sc[...] = jnp.zeros(acc_sc.shape, dtype=jnp.float32)

    k = k_ref[0, 0]                                         # (tkv, hd) f32
    v = v_ref[0, 0]                                         # (tkv, hd) f32
    kr = rope(k, cosk_ref[0], sink_ref[0])
    ki = jnp.clip(jnp.round(kr / k_scale), -128.0, 127.0).astype(jnp.bfloat16)
    vi = jnp.clip(jnp.round(v / v_scale), -128.0, 127.0).astype(jnp.bfloat16)
    mask = mask_ref[0, 0]                                   # (q_len, tkv) additive

    # QK^T on exact bf16 integers; fold q_scale*k_scale/sqrt(d) after the matmul.
    s = jax.lax.dot_general(qi_sc[...], ki, (((1,), (1,)), ((), ())),
                            preferred_element_type=jnp.float32)
    s = s * (q_scale * k_scale / math.sqrt(head_dim)) + mask

    # Online softmax accumulation (fp32 statistics).
    m_prev = m_sc[...]
    m_new = jnp.maximum(m_prev, jnp.max(s, axis=-1, keepdims=True))
    alpha = jnp.exp(m_prev - m_new)
    p = jnp.exp(s - m_new)                                  # (q_len, tkv) f32
    l_sc[...] = alpha * l_sc[...] + jnp.sum(p, axis=-1, keepdims=True)
    acc_sc[...] = alpha * acc_sc[...] + jax.lax.dot_general(
        p.astype(jnp.bfloat16), vi, (((1,), (0,)), ((), ())),
        preferred_element_type=jnp.float32)
    m_sc[...] = m_new

    @pl.when(kv_i == pl.num_programs(2) - 1)
    def _finalize():
        # Exact division for reference parity (pl.reciprocal(approx=True) would
        # introduce ~1e-3 relative error in probs/output).
        inv_l = 1.0 / l_sc[...]
        out = acc_sc[...] * inv_l * v_scale
        o_ref[0, 0] = jnp.clip(jnp.round(out / out_scale),
                               -127.0, 127.0).astype(jnp.int8)
        if aw_ref is not None:
            # Only emitted when the kv axis has a single tile -> p covers the full row.
            aw_ref[0, 0] = p * inv_l


def fused_attention(qkv_t, cos, sin, mask, q_scale, k_scale, v_scale, out_scale,
                    num_heads, head_dim, return_attn_weights=False):
    """qkv_t: (bsz, 3*nh, seq, hd) f32 (q heads | k heads | v heads along axis 1),
    cos/sin: (bsz, seq, hd), mask: (bsz, 1, seq, seq) additive f32.
    Returns ((bsz, nh, seq, hd) int8, optional (bsz, nh, seq, seq) f32 probs)."""
    bsz, three_nh, q_len, hd = qkv_t.shape
    nh = num_heads
    assert three_nh == 3 * nh and hd == head_dim
    kv_len = q_len

    if return_attn_weights:
        tkv = kv_len                       # single kv tile -> exact probs emitted
    else:
        tkv = _pick_tile(kv_len, (512, 256, 128))
    nkv = kv_len // tkv

    kernel = functools.partial(
        flash_attn_kernel,
        q_scale=float(q_scale), k_scale=float(k_scale), v_scale=float(v_scale),
        out_scale=float(out_scale), head_dim=hd, with_weights=return_attn_weights)

    in_specs = [
        pl.BlockSpec((1, 1, q_len, hd), lambda b, h, kv: (b, h, 0, 0)),           # q head h
        pl.BlockSpec((1, 1, tkv, hd), lambda b, h, kv: (b, nh + h, kv, 0)),       # k head h
        pl.BlockSpec((1, 1, tkv, hd), lambda b, h, kv: (b, 2 * nh + h, kv, 0)),   # v head h
        pl.BlockSpec((1, q_len, hd), lambda b, h, kv: (b, 0, 0)),                 # cos (q rows)
        pl.BlockSpec((1, q_len, hd), lambda b, h, kv: (b, 0, 0)),                 # sin (q rows)
        pl.BlockSpec((1, tkv, hd), lambda b, h, kv: (b, kv, 0)),                  # cos (k rows)
        pl.BlockSpec((1, tkv, hd), lambda b, h, kv: (b, kv, 0)),                  # sin (k rows)
        pl.BlockSpec((1, 1, q_len, tkv), lambda b, h, kv: (b, 0, 0, kv)),         # mask
    ]
    out_specs = [pl.BlockSpec((1, 1, q_len, hd), lambda b, h, kv: (b, h, 0, 0))]
    out_shape = [jax.ShapeDtypeStruct((bsz, nh, q_len, hd), jnp.int8)]
    if return_attn_weights:
        out_specs.append(
            pl.BlockSpec((1, 1, q_len, kv_len), lambda b, h, kv: (b, h, 0, 0)))
        out_shape.append(
            jax.ShapeDtypeStruct((bsz, nh, q_len, kv_len), jnp.float32))

    scratch_shapes = [
        pltpu.VMEM((q_len, hd), jnp.bfloat16),   # quantized RoPE'd q (cached over kv)
        pltpu.VMEM((q_len, 1), jnp.float32),     # running max
        pltpu.VMEM((q_len, 1), jnp.float32),     # running denom
        pltpu.VMEM((q_len, hd), jnp.float32),    # running PV accumulator
    ]

    results = pl.pallas_call(
        kernel,
        grid=(bsz, nh, nkv),
        in_specs=in_specs,
        out_specs=out_specs,
        out_shape=out_shape,
        scratch_shapes=scratch_shapes,
        compiler_params=pltpu.CompilerParams(
            dimension_semantics=("parallel", "parallel", "arbitrary"),
            vmem_limit_bytes=32 * 1024 * 1024),
    )(qkv_t, qkv_t, qkv_t, cos, sin, cos, sin, mask)

    if return_attn_weights:
        attn_int8, attn_w = results
    else:
        attn_int8, attn_w = results[0], None
    return attn_int8, attn_w


# ----------------------------------------------------------------------------
# RoPE cos/sin tables (HF Llama convention) -- cheap JAX glue; rotation is in-kernel.
# ----------------------------------------------------------------------------
def rope_cos_sin(position_ids, head_dim, theta):
    inv_freq = 1.0 / (theta ** (jnp.arange(0, head_dim, 2, dtype=jnp.float32) / head_dim))
    t = position_ids.astype(jnp.float32)                   # (bsz, seq)
    freqs = t[..., None] * inv_freq[None, None, :]          # (bsz, seq, head_dim/2)
    emb = jnp.concatenate([freqs, freqs], axis=-1)          # (bsz, seq, head_dim)
    return jnp.cos(emb), jnp.sin(emb)


# ----------------------------------------------------------------------------
# Full module forward
# ----------------------------------------------------------------------------
class W4A8LlamaAttentionPallas:
    def __init__(self, key, hidden_size, num_heads, num_kv_heads, rope_theta=10000.0):
        assert num_heads == num_kv_heads, "kernel assumes num_kv_heads == num_heads"
        self.hidden_size = hidden_size
        self.num_heads = num_heads
        self.head_dim = hidden_size // num_heads
        self.rope_theta = rope_theta

        # per-tensor scales (registered buffers in the torch module, value 0.1)
        self.input_scale = 0.1
        self.q_proj_scale = 0.1
        self.k_proj_scale = 0.1
        self.v_proj_scale = 0.1
        self.out_input_scale = 0.1

        def make_linear(k, out_f, in_f):
            k1, k2, k3 = jax.random.split(k, 3)
            w = jax.random.randint(k1, (out_f, in_f), -8, 8, dtype=jnp.int8)
            ws = 0.02 + 0.01 * jax.random.uniform(k2, (out_f,), dtype=jnp.float32)
            b = 0.05 * jax.random.normal(k3, (out_f,), dtype=jnp.float32)
            return w, ws, b

        kq, kk, kv, ko = jax.random.split(key, 4)
        q_w, q_ws, q_b = make_linear(kq, hidden_size, hidden_size)
        k_w, k_ws, k_b = make_linear(kk, hidden_size, hidden_size)
        v_w, v_ws, v_b = make_linear(kv, hidden_size, hidden_size)
        o_w, self.o_ws, self.o_b = make_linear(ko, hidden_size, hidden_size)

        # Fused QKV weights (single GEMM) pre-transposed to (K, N) for the MXU.
        qkv_w = jnp.concatenate([q_w, k_w, v_w], axis=0)            # (3H, H) int8
        self.qkv_w_t = jnp.transpose(qkv_w)                         # (H, 3H)
        self.qkv_ws = jnp.concatenate([q_ws, k_ws, v_ws], axis=0)   # (3H,)
        self.qkv_b = jnp.concatenate([q_b, k_b, v_b], axis=0)       # (3H,)
        self.o_w_t = jnp.transpose(o_w)                             # (H, H)

    def __call__(self, hidden_states_int8, attention_mask, position_ids,
                 output_attentions=False):
        bsz, q_len, hidden = hidden_states_int8.shape
        nh, hd = self.num_heads, self.head_dim
        x2d = hidden_states_int8.reshape(bsz * q_len, hidden)

        # Fused q/k/v projection (W4A8 -> fp32) in one tiled Pallas GEMM.
        qkv = w4a8_linear(x2d, self.qkv_w_t, self.qkv_ws, self.qkv_b, self.input_scale)

        # Single layout pass: (M, 3H) -> (bsz, 3*nh, q_len, hd); heads ordered
        # [q0..q_{nh-1} | k0.. | v0..] along axis 1.  (Replaces 3 slices + 3 transposes.)
        qkv_t = qkv.reshape(bsz, q_len, 3 * nh, hd).transpose(0, 2, 1, 3)

        cos, sin = rope_cos_sin(position_ids, hd, self.rope_theta)

        # Fused attention (RoPE + fake-quant + QK^T + mask + online softmax + PV
        # + int8 requant) tiled over (batch, head, kv).  repeat_kv is a no-op.
        attn_int8, attn_weights = fused_attention(
            qkv_t, cos, sin, attention_mask,
            self.q_proj_scale, self.k_proj_scale, self.v_proj_scale,
            self.out_input_scale, nh, hd, return_attn_weights=output_attentions)

        # (bsz, nh, q_len, hd) int8 -> (bsz*q_len, hidden); 1-byte layout pass only.
        attn_flat = attn_int8.transpose(0, 2, 1, 3).reshape(bsz * q_len, hidden)

        # o_proj on the already-quantized int8 attention output.
        out = w4a8_linear(attn_flat, self.o_w_t, self.o_ws, self.o_b,
                          self.out_input_scale)
        return out.reshape(bsz, q_len, hidden), attn_weights


def make_causal_mask(bsz, q_len, dtype=jnp.float32):
    neg = jnp.finfo(dtype).min
    row = jnp.arange(q_len)[:, None]
    col = jnp.arange(q_len)[None, :]
    mask = jnp.where(col > row, neg, 0.0).astype(dtype)            # (q_len, q_len)
    return jnp.broadcast_to(mask[None, None], (bsz, 1, q_len, q_len))


if __name__ == "__main__":
    # Small shapes consistent with the module: bsz=2, seq=8, hidden=128,
    # num_heads=4, head_dim=32, num_kv_heads=4.
    bsz, q_len, hidden, num_heads = 2, 8, 128, 4

    key = jax.random.PRNGKey(0)
    k_mod, k_x = jax.random.split(key)

    attn = W4A8LlamaAttentionPallas(k_mod, hidden, num_heads, num_heads)

    # input hidden_states are already int8-quantized activations (A8 path)
    hidden_states = jax.random.randint(
        k_x, (bsz, q_len, hidden), -128, 128, dtype=jnp.int8)
    attention_mask = make_causal_mask(bsz, q_len)
    position_ids = jnp.broadcast_to(jnp.arange(q_len)[None, :], (bsz, q_len))

    # Hot path: no attention-weights HBM traffic.
    out_fast, aw_none = attn(hidden_states, attention_mask, position_ids,
                             output_attentions=False)
    jax.block_until_ready(out_fast)
    assert out_fast.shape == (bsz, q_len, hidden)
    assert aw_none is None

    # Reference-parity path: also emit exact softmax attention weights.
    out, attn_weights = attn(hidden_states, attention_mask, position_ids,
                             output_attentions=True)
    jax.block_until_ready((out, attn_weights))

    assert out.shape == (bsz, q_len, hidden)
    assert attn_weights.shape == (bsz, num_heads, q_len, q_len)
    assert bool(jnp.all(jnp.isfinite(out)))
    assert bool(jnp.all(jnp.isfinite(attn_weights)))
    assert bool(jnp.allclose(out, out_fast, atol=1e-3, rtol=1e-3))
    print("KERNEL_OK")
</pallas_src>

<mosaic_0001>
module attributes {stable_mosaic.version = 11 : i64} {
  func.func @w4a8_linear_kernel_bf16(%arg0: i32, %arg1: i32, %arg2: i32, %arg3: memref<16x128xi8, #tpu.memory_space<vmem>>, %arg4: memref<128x128xi8, #tpu.memory_space<vmem>>, %arg5: memref<1x128xf32, #tpu.memory_space<vmem>>, %arg6: memref<1x128xf32, #tpu.memory_space<vmem>>, %arg7: memref<16x128xf32, #tpu.memory_space<vmem>>) attributes {dimension_semantics = [#tpu.dimension_semantics<parallel>, #tpu.dimension_semantics<parallel>, #tpu.dimension_semantics<arbitrary>], iteration_bounds = array<i64: 1, 3, 1>, scalar_prefetch = 0 : i64, scratch_operands = 0 : i64, tpu.core_type = #tpu.core_type<tc>, window_params = [{transform_indices = @transform_0, window_bounds = array<i64: 16, 128>}, {transform_indices = @transform_1, window_bounds = array<i64: 128, 128>}, {transform_indices = @transform_2, window_bounds = array<i64: 1, 128>}, {transform_indices = @transform_3, window_bounds = array<i64: 1, 128>}, {transform_indices = @transform_4, window_bounds = array<i64: 16, 128>}]} {
    %c0_i32 = arith.constant 0 : i32
    %0 = arith.cmpi eq, %arg2, %c0_i32 : i32
    %1 = arith.extui %0 : i1 to i32
    %c0_i32_0 = arith.constant 0 : i32
    %2 = arith.cmpi ne, %1, %c0_i32_0 : i32
    scf.if %2 {
      %cst_10 = arith.constant 0.000000e+00 : f32
      %14 = vector.broadcast %cst_10 : f32 to vector<16x128xf32>
      %c0_11 = arith.constant 0 : index
      %c0_12 = arith.constant 0 : index
      %15 = vector.load %arg7[%c0_11, %c0_12] : memref<16x128xf32, #tpu.memory_space<vmem>>, vector<16x128xf32>
      tpu.vector_store %arg7[%c0_11, %c0_12], %14 {strides = array<i32>} : memref<16x128xf32, #tpu.memory_space<vmem>>, vector<16x128xf32>,
    } else {
    }
    %c0 = arith.constant 0 : index
    %c0_1 = arith.constant 0 : index
    %3 = vector.load %arg3[%c0, %c0_1] : memref<16x128xi8, #tpu.memory_space<vmem>>, vector<16x128xi8>
    %4 = arith.sitofp %3 : vector<16x128xi8> to vector<16x128xbf16>
    %c0_2 = arith.constant 0 : index
    %c0_3 = arith.constant 0 : index
    %5 = vector.load %arg4[%c0_2, %c0_3] : memref<128x128xi8, #tpu.memory_space<vmem>>, vector<128x128xi8>
    %6 = arith.sitofp %5 : vector<128x128xi8> to vector<128x128xbf16>
    %c0_4 = arith.constant 0 : index
    %c0_5 = arith.constant 0 : index
    %7 = vector.load %arg7[%c0_4, %c0_5] : memref<16x128xf32, #tpu.memory_space<vmem>>, vector<16x128xf32>
    %cst = arith.constant dense<0.000000e+00> : vector<16x128xf32>
    %8 = tpu.matmul %4, %6, %cst {dimension_numbers = #tpu.dot_dimension_numbers<[1], [0], [0], [1], [0, 0, 1, 1], [], []>} : vector<16x128xbf16>, vector<128x128xbf16>, vector<16x128xf32> -> vector<16x128xf32>
    %9 = arith.addf %7, %8 : vector<16x128xf32>
    %c0_6 = arith.constant 0 : index
    %c0_7 = arith.constant 0 : index
    %10 = vector.load %arg7[%c0_6, %c0_7] : memref<16x128xf32, #tpu.memory_space<vmem>>, vector<16x128xf32>
    tpu.vector_store %arg7[%c0_6, %c0_7], %9 {strides = array<i32>} : memref<16x128xf32, #tpu.memory_space<vmem>>, vector<16x128xf32>,
    %c0_i32_8 = arith.constant 0 : i32
    %11 = arith.cmpi eq, %arg2, %c0_i32_8 : i32
    %12 = arith.extui %11 : i1 to i32
    %c0_i32_9 = arith.constant 0 : i32
    %13 = arith.cmpi ne, %12, %c0_i32_9 : i32
    scf.if %13 {
      %c0_10 = arith.constant 0 : index
      %c0_11 = arith.constant 0 : index
      %14 = vector.load %arg7[%c0_10, %c0_11] : memref<16x128xf32, #tpu.memory_space<vmem>>, vector<16x128xf32>
      %c0_12 = arith.constant 0 : index
      %c0_13 = arith.constant 0 : index
      %15 = vector.load %arg5[%c0_12, %c0_13] : memref<1x128xf32, #tpu.memory_space<vmem>>, vector<1x128xf32>
      %16 = vector.broadcast %15 : vector<1x128xf32> to vector<16x128xf32>
      %17 = arith.mulf %14, %16 : vector<16x128xf32>
      %c0_14 = arith.constant 0 : index
      %c0_15 = arith.constant 0 : index
      %18 = vector.load %arg6[%c0_14, %c0_15] : memref<1x128xf32, #tpu.memory_space<vmem>>, vector<1x128xf32>
      %19 = vector.broadcast %18 : vector<1x128xf32> to vector<16x128xf32>
      %20 = arith.addf %17, %19 : vector<16x128xf32>
      %c0_16 = arith.constant 0 : index
      %c0_17 = arith.constant 0 : index
      %21 = vector.load %arg7[%c0_16, %c0_17] : memref<16x128xf32, #tpu.memory_space<vmem>>, vector<16x128xf32>
      tpu.vector_store %arg7[%c0_16, %c0_17], %20 {strides = array<i32>} : memref<16x128xf32, #tpu.memory_space<vmem>>, vector<16x128xf32>,
    } else {
    }
    return
  }
  func.func @transform_0(%arg0: i32, %arg1: i32, %arg2: i32) -> (i32, i32) {
    %c0_i32 = arith.constant 0 : i32
    return %arg0, %arg2 : i32, i32
  }
  func.func @transform_1(%arg0: i32, %arg1: i32, %arg2: i32) -> (i32, i32) {
    %c0_i32 = arith.constant 0 : i32
    return %arg2, %arg1 : i32, i32
  }
  func.func @transform_2(%arg0: i32, %arg1: i32, %arg2: i32) -> (i32, i32) {
    %c0_i32 = arith.constant 0 : i32
    %c0_i32_0 = arith.constant 0 : i32
    return %c0_i32, %arg1 : i32, i32
  }
  func.func @transform_3(%arg0: i32, %arg1: i32, %arg2: i32) -> (i32, i32) {
    %c0_i32 = arith.constant 0 : i32
    %c0_i32_0 = arith.constant 0 : i32
    return %c0_i32, %arg1 : i32, i32
  }
  func.func @transform_4(%arg0: i32, %arg1: i32, %arg2: i32) -> (i32, i32) {
    %c0_i32 = arith.constant 0 : i32
    return %arg0, %arg1 : i32, i32
  }
}

</mosaic_0001>

<llo_original>
// kernel: tpu_custom_call.1
$region0: #{tpu_custom_call.1}
  #allocation0 [shape = 'u32[]', space=smem, size = 0x4, offset = 0x4, fixed_abs, tag = 'smem constant byte address 0x4 - core index']
  #allocation1 [shape = 'u32[144,128]{1,0:T(1,128)}', space=vmem, size = 0x12000, scoped, tag = 'internal scratch']
  %s0 = inlined_call_operand.hbm [shape: s8[16,128], index: 0, kind: input, shape index: {}]
  %s1 = inlined_call_operand.hbm [shape: s8[128,384], index: 1, kind: input, shape index: {}]
  %s2 = inlined_call_operand.vmem [shape: f32[1,384], index: 2, kind: input, shape index: {}]
  %s3 = inlined_call_operand.hbm [shape: f32[1,384], index: 3, kind: input, shape index: {}]
  %s4 = inlined_call_operand.hbm [shape: f32[16,384], index: 4, kind: output, shape index: {}]
  %s5 = sld [smem:[#allocation0]]
  $region69: #{tpu_custom_call.1} parent=0
    _
  %s7 = ssub.s32 1, %s5
  %s8 = scalar_select 0, %s7, %s5
  $region1: #{tpu_custom_call.1} parent=0
    #allocation2 [shape = 'u8[2048]{0}', space=vmem, size = 0x800, scoped, tag = 'input window, operand 0, single buffered']
    #allocation3 [shape = 's32[2]{0}', space=sflag, size = 0x8, scoped, tag = 'scoped memory for tpu_custom_call.1']
    #allocation4 [shape = 's32[2]{0}', space=sflag, size = 0x8, scoped, tag = 'scoped memory for tpu_custom_call.1']
    #allocation5 [shape = 'u8[32768]{0}', space=vmem, size = 0x8000, scoped, tag = 'input window, operand 1']
    #allocation6 [shape = 's32[2]{0}', space=sflag, size = 0x8, scoped, tag = 'scoped memory for tpu_custom_call.1']
    #allocation7 [shape = 'u8[1024]{0}', space=vmem, size = 0x400, scoped, tag = 'input window, operand 3']
    #allocation8 [shape = 'u8[16384]{0}', space=vmem, size = 0x4000, scoped, tag = 'output window, operand 0']
    %9 = vsyncpa [#allocation3], 0
    %10 = vsyncpa [#allocation6], 0
    %s11 = scalar_lea.sflag [#allocation6], 1
    %12 = vsyncpa %s11, 0
    %13 = vsyncpa [#allocation4], 0
    %s14 = scalar_lea.sflag [#allocation4], 1
    %15 = vsyncpa %s14, 0
    loop: start=0, step=1, limit=5
    $region2: #{tpu_custom_call.1} parent=1 // loop_pre_header
      _
    $region3: #{tpu_custom_call.1} parent=1 // loop_header
      %s17 = sphi 0, %s21
      %p18 = scmp.ge.s32.totalorder %s17, 5
      %s24 = sphi 0, %s43
      %s25 = sphi 0, %s39
      %s26 = sphi 0, %s35
      %s27 = sphi 0, %s24
      %s28 = sphi 0, %s25
      %s29 = sphi 0, %s26
      %s30 = sphi 0, %s27
      %s31 = sphi 0, %s28
      %s32 = sphi 0, %s29
      %s48 = sphi 0, %s50
      %s51 = sphi 0, %s48
      %s52 = sphi 0, %s51
      %s68 = sphi 0, %s52
      %s76 = sphi 0, %s78
      %s79 = sphi 0, %s76
      %s80 = sphi 0, %s79
      %s96 = sphi 0, %s80
      %s102 = sphi 0, %s104
      %s105 = sphi 0, %s102
      %s106 = sphi 0, %s105
      %s122 = sphi 0, %s106
      %s128 = sphi 0, %s130
      %s131 = sphi 0, %s128
      %s132 = sphi 0, %s131
      %s148 = sphi 0, %s132
      %s156 = sphi 0, %s158
      %s159 = sphi 0, %s156
      %s160 = sphi 0, %s159
      %s176 = sphi 0, %s160
    $region4: #{tpu_custom_call.1} parent=1 // loop_header_branch
      %20 = sbr.rel (%p18) target = $region8
    $region5: #{tpu_custom_call.1} parent=1 // loop_body
      %s22 = ssub.s32 %s17, 1
      %s23 = ssub.s32 %s17, 2
      %s33 = sadd.s32 1, %s26
      %p34 = scmp.ge.s32.totalorder %s33, 1
      %s35 = scalar_select %p34, 0, %s33
      %s36 = sadd.s32 1, %s25
      %s37 = scalar_select %p34, %s36, %s25
      %p38 = scmp.ge.s32.totalorder %s37, 3
      %s39 = scalar_select %p38, 0, %s37
      %s40 = sadd.s32 1, %s24
      %s41 = scalar_select %p38, %s40, %s24
      %p42 = scmp.ge.s32.totalorder %s41, 1
      %s43 = scalar_select %p42, 0, %s41
      %s44 = ssub.s32 %s24, %s43
      %s45 = ssub.s32 %s26, %s35
      %s46 = sor.u32 %s44, %s45
      %p47 = scmp.eq.s32.totalorder %s46, 0
      %s49 = sadd.s32 %s48, 1
      %s50 = scalar_select %p47, %s48, %s49
      %p53 = pneg %p47
      %p54 = scmp.eq.s32.totalorder %s17, 2
      %p55 = por %p53, %p54
      %p56 = scmp.ne.s32.totalorder %s48, %s51
      %p57 = scmp.eq.s32.totalorder %s17, 0
      %p58 = por %p56, %p57
      %p59 = scmp.ne.s32.totalorder %s48, %s51
      %p60 = scmp.eq.s32.totalorder %s22, 2
      %p61 = por %p59, %p60
      %p62 = scmp.ne.s32.totalorder %s51, %s52
      %p63 = scmp.eq.s32.totalorder %s22, 0
      %p64 = por %p62, %p63
      %p65 = scmp.ne.s32.totalorder %s51, %s52
      %p66 = scmp.eq.s32.totalorder %s23, 2
      %p67 = por %p65, %p66
      %p69 = scmp.ne.s32.totalorder %s52, %s68
      %p70 = scmp.eq.s32.totalorder %s23, 0
      %p71 = por %p69, %p70
      %s72 = ssub.s32 %s26, %s35
      %s73 = ssub.s32 %s25, %s39
      %s74 = sor.u32 %s72, %s73
      %p75 = scmp.eq.s32.totalorder %s74, 0
      %s77 = sadd.s32 %s76, 1
      %s78 = scalar_select %p75, %s76, %s77
      %p81 = pneg %p75
      %p82 = scmp.eq.s32.totalorder %s17, 2
      %p83 = por %p81, %p82
      %p84 = scmp.ne.s32.totalorder %s76, %s79
      %p85 = scmp.eq.s32.totalorder %s17, 0
      %p86 = por %p84, %p85
      %p87 = scmp.ne.s32.totalorder %s76, %s79
      %p88 = scmp.eq.s32.totalorder %s22, 2
      %p89 = por %p87, %p88
      %p90 = scmp.ne.s32.totalorder %s79, %s80
      %p91 = scmp.eq.s32.totalorder %s22, 0
      %p92 = por %p90, %p91
      %p93 = scmp.ne.s32.totalorder %s79, %s80
      %p94 = scmp.eq.s32.totalorder %s23, 2
      %p95 = por %p93, %p94
      %p97 = scmp.ne.s32.totalorder %s80, %s96
      %p98 = scmp.eq.s32.totalorder %s23, 0
      %p99 = por %p97, %p98
      %s100 = ssub.s32 %s25, %s39
      %p101 = scmp.eq.s32.totalorder %s100, 0
      %s103 = sadd.s32 %s102, 1
      %s104 = scalar_select %p101, %s102, %s103
      %p107 = pneg %p101
      %p108 = scmp.eq.s32.totalorder %s17, 2
      %p109 = por %p107, %p108
      %p110 = scmp.ne.s32.totalorder %s102, %s105
      %p111 = scmp.eq.s32.totalorder %s17, 0
      %p112 = por %p110, %p111
      %p113 = scmp.ne.s32.totalorder %s102, %s105
      %p114 = scmp.eq.s32.totalorder %s22, 2
      %p115 = por %p113, %p114
      %p116 = scmp.ne.s32.totalorder %s105, %s106
      %p117 = scmp.eq.s32.totalorder %s22, 0
      %p118 = por %p116, %p117
      %p119 = scmp.ne.s32.totalorder %s105, %s106
      %p120 = scmp.eq.s32.totalorder %s23, 2
      %p121 = por %p119, %p120
      %p123 = scmp.ne.s32.totalorder %s106, %s122
      %p124 = scmp.eq.s32.totalorder %s23, 0
      %p125 = por %p123, %p124
      %s126 = ssub.s32 %s25, %s39
      %p127 = scmp.eq.s32.totalorder %s126, 0
      %s129 = sadd.s32 %s128, 1
      %s130 = scalar_select %p127, %s128, %s129
      %p133 = pneg %p127
      %p134 = scmp.eq.s32.totalorder %s17, 2
      %p135 = por %p133, %p134
      %p136 = scmp.ne.s32.totalorder %s128, %s131
      %p137 = scmp.eq.s32.totalorder %s17, 0
      %p138 = por %p136, %p137
      %p139 = scmp.ne.s32.totalorder %s128, %s131
      %p140 = scmp.eq.s32.totalorder %s22, 2
      %p141 = por %p139, %p140
      %p142 = scmp.ne.s32.totalorder %s131, %s132
      %p143 = scmp.eq.s32.totalorder %s22, 0
      %p144 = por %p142, %p143
      %p145 = scmp.ne.s32.totalorder %s131, %s132
      %p146 = scmp.eq.s32.totalorder %s23, 2
      %p147 = por %p145, %p146
      %p149 = scmp.ne.s32.totalorder %s132, %s148
      %p150 = scmp.eq.s32.totalorder %s23, 0
      %p151 = por %p149, %p150
      %s152 = ssub.s32 %s24, %s43
      %s153 = ssub.s32 %s25, %s39
      %s154 = sor.u32 %s152, %s153
      %p155 = scmp.eq.s32.totalorder %s154, 0
      %s157 = sadd.s32 %s156, 1
      %s158 = scalar_select %p155, %s156, %s157
      %p161 = pneg %p155
      %p162 = scmp.eq.s32.totalorder %s17, 2
      %p163 = por %p161, %p162
      %p164 = scmp.ne.s32.totalorder %s156, %s159
      %p165 = scmp.eq.s32.totalorder %s17, 0
      %p166 = por %p164, %p165
      %p167 = scmp.ne.s32.totalorder %s156, %s159
      %p168 = scmp.eq.s32.totalorder %s22, 2
      %p169 = por %p167, %p168
      %p170 = scmp.ne.s32.totalorder %s159, %s160
      %p171 = scmp.eq.s32.totalorder %s22, 0
      %p172 = por %p170, %p171
      %p173 = scmp.ne.s32.totalorder %s159, %s160
      %p174 = scmp.eq.s32.totalorder %s23, 2
      %p175 = por %p173, %p174
      %p177 = scmp.ne.s32.totalorder %s160, %s176
      %p178 = scmp.eq.s32.totalorder %s23, 0
      %p179 = por %p177, %p178
      %p180 = scmp.le.s32.totalorder 1, %s17
      %p181 = scmp.lt.s32.totalorder %s17, 4
      %p182 = pnand %p180, %p181
      %p183 = pneg %p182
      // Predicated region
      $region9: #{tpu_custom_call.1} parent=5 // pred_check
        _
      $region10: #{tpu_custom_call.1} parent=5 // pred_check_branch
        %185 = sbr.rel (%p182) target = $region12
      $region11: #{tpu_custom_call.1} parent=5 // pred_region
        %s186 = ssub.s32 %s17, 1
        // Predicated region
        $region13: #{tpu_custom_call.1} parent=11 // pred_check
          %p187 = pneg %p64
        $region14: #{tpu_custom_call.1} parent=11 // pred_check_branch
          %189 = sbr.rel (%p187) target = $region16
        $region15: #{tpu_custom_call.1} parent=11 // pred_region
          %s190 = smul.u32 2, %s27
          %s192 = ssub.s32 64, 64
          %193 = vsyncadd [#allocation3], %s192
          %s194 = sadd.s32 %s29, %s190
          %s195 = smul.addr %s194, 32
          %s196 = scalar_lea.hbm %s0, %s195
          %s197 = sshll.u32 [#allocation2], 4
          %s198 = int_to_ptr.vmem [resolvable:$true] %s197
          %203 = dma.hbm_to_vmem [thread:$0]  %s196, 64, %s198, [#allocation3], 32, 32, 2
        $region16: #{tpu_custom_call.1} parent=11 // pred_fallthru
          _
      $region12: #{tpu_custom_call.1} parent=5 // pred_fallthru
        _
      %p204 = scmp.lt.s32.totalorder %s17, 3
      // Predicated region
      $region17: #{tpu_custom_call.1} parent=5 // pred_check
        %p205 = pneg %p204
      $region18: #{tpu_custom_call.1} parent=5 // pred_check_branch
        %207 = sbr.rel (%p205) target = $region20
      $region19: #{tpu_custom_call.1} parent=5 // pred_region
        // Predicated region
        $region21: #{tpu_custom_call.1} parent=19 // pred_check
          %p208 = pneg %p86
        $region22: #{tpu_custom_call.1} parent=19 // pred_check_branch
          %210 = sbr.rel (%p208) target = $region24
        $region23: #{tpu_custom_call.1} parent=19 // pred_region
          %s211 = sand.u32 %s17, 1
          %s212 = scalar_lea.sflag [#allocation6], %s211
          %s213 = sand.u32 %s76, 1
          %s214 = smul.addr %s213, 32
          %s215 = scalar_lea.vmem [#allocation5], %s214
          %s216 = smul.u32 4, %s26
          %s218 = ssub.s32 512, 512
          %219 = vsyncadd %s212, %s218
          %s220 = smul.addr %s216, 3
          %s221 = sadd.s32 %s25, %s220
          %s222 = smul.addr %s221, 128
          %s223 = scalar_lea.hbm %s1, %s222
          %s224 = sshll.u32 %s215, 4
          %s225 = int_to_ptr.vmem [resolvable:$true] %s224
          %230 = dma.hbm_to_vmem [thread:$0]  %s223, 512, %s225, %s212, 384, 128, 8
        $region24: #{tpu_custom_call.1} parent=19 // pred_fallthru
          _
        // Predicated region
        $region25: #{tpu_custom_call.1} parent=19 // pred_check
          %p231 = pneg %p112
        $region26: #{tpu_custom_call.1} parent=19 // pred_check_branch
          %233 = sbr.rel (%p231) target = $region28
        $region27: #{tpu_custom_call.1} parent=19 // pred_region
          %p234 = scmp.lt.s32.totalorder %s25, 2
          %s235 = scalar_select %p234, %s25, 2
          %s236 = scalar_lea.vmem %s2, %s235
        $region28: #{tpu_custom_call.1} parent=19 // pred_fallthru
          _
        // Predicated region
        $region29: #{tpu_custom_call.1} parent=19 // pred_check
          %p237 = pneg %p138
        $region30: #{tpu_custom_call.1} parent=19 // pred_check_branch
          %239 = sbr.rel (%p237) target = $region32
        $region31: #{tpu_custom_call.1} parent=19 // pred_region
          %s240 = sand.u32 %s17, 1
          %s241 = scalar_lea.sflag [#allocation6], %s240
          %s242 = sand.u32 %s128, 1
          %s243 = scalar_lea.vmem [#allocation7], %s242
          %s245 = ssub.s32 16, 16
          %246 = vsyncadd %s241, %s245
          %s247 = smul.addr %s25, 16
          %s248 = scalar_lea.hbm %s3, %s247
          %s250 = sshll.u32 %s243, 4
          %s251 = int_to_ptr.vmem [resolvable:$true] %s250
          %253 = dma.hbm_to_vmem [thread:$0]  %s248, 16, %s251, %s241
        $region32: #{tpu_custom_call.1} parent=19 // pred_fallthru
          _
      $region20: #{tpu_custom_call.1} parent=5 // pred_fallthru
        _
      %p254 = scmp.le.s32.totalorder 1, %s17
      %p255 = scmp.lt.s32.totalorder %s17, 4
      %p256 = pnand %p254, %p255
      %p257 = pneg %p256
      // Predicated region
      $region33: #{tpu_custom_call.1} parent=5 // pred_check
        _
      $region34: #{tpu_custom_call.1} parent=5 // pred_check_branch
        %259 = sbr.rel (%p256) target = $region36
      $region35: #{tpu_custom_call.1} parent=5 // pred_region
        %s260 = ssub.s32 %s17, 1
        // Predicated region
        $region37: #{tpu_custom_call.1} parent=35 // pred_check
          %p261 = pneg %p64
        $region38: #{tpu_custom_call.1} parent=35 // pred_check_branch
          %263 = sbr.rel (%p261) target = $region40
        $region39: #{tpu_custom_call.1} parent=35 // pred_region
          %264 = dma.done [#allocation3], 64
        $region40: #{tpu_custom_call.1} parent=35 // pred_fallthru
          _
        %s265 = sand.u32 %s22, 1
        %s266 = scalar_lea.sflag [#allocation6], %s265
        %s267 = sand.u32 %s79, 1
        %s268 = smul.addr %s267, 32
        %s269 = scalar_lea.vmem [#allocation5], %s268
        // Predicated region
        $region41: #{tpu_custom_call.1} parent=35 // pred_check
          %p270 = pneg %p92
        $region42: #{tpu_custom_call.1} parent=35 // pred_check_branch
          %272 = sbr.rel (%p270) target = $region44
        $region43: #{tpu_custom_call.1} parent=35 // pred_region
          %273 = dma.done %s266, 512
        $region44: #{tpu_custom_call.1} parent=35 // pred_fallthru
          _
        %s274 = sand.u32 %s22, 1
        %s275 = scalar_lea.sflag [#allocation6], %s274
        %s276 = sand.u32 %s131, 1
        %s277 = scalar_lea.vmem [#allocation7], %s276
        // Predicated region
        $region45: #{tpu_custom_call.1} parent=35 // pred_check
          %p278 = pneg %p144
        $region46: #{tpu_custom_call.1} parent=35 // pred_check_branch
          %280 = sbr.rel (%p278) target = $region48
        $region47: #{tpu_custom_call.1} parent=35 // pred_region
          %281 = dma.done %s275, 16
        $region48: #{tpu_custom_call.1} parent=35 // pred_fallthru
          _
        %p282 = pneg %p64
        %p283 = pneg %p61
        %s284 = sand.u32 %s22, 1
        %s285 = scalar_lea.sflag [#allocation6], %s284
        %s286 = sand.u32 %s79, 1
        %s287 = smul.addr %s286, 32
        %s288 = scalar_lea.vmem [#allocation5], %s287
        %p289 = pneg %p92
        %p290 = pneg %p89
        %p291 = scmp.lt.s32.totalorder %s28, 2
        %s292 = scalar_select %p291, %s28, 2
        %s293 = scalar_lea.vmem %s2, %s292
        %p294 = pneg %p118
        %p295 = pneg %p115
        %s296 = sand.u32 %s22, 1
        %s297 = scalar_lea.sflag [#allocation6], %s296
        %s298 = sand.u32 %s131, 1
        %s299 = scalar_lea.vmem [#allocation7], %s298
        %p300 = pneg %p144
        %p301 = pneg %p141
        %p302 = pneg %p172
        %p303 = pneg %p169
        %s304 = sand.u32 %s159, 1
        %s305 = scalar_lea.sflag [#allocation4], %s304
        %s306 = sand.u32 %s159, 1
        %s307 = smul.addr %s306, 16
        %s308 = scalar_lea.vmem [#allocation8], %s307
        %s309 = smul.u32 2, %s27
        %s310 = smul.u32 4, %s29
        %p311 = scmp.lt.s32.totalorder %s28, 2
        %s312 = scalar_select %p311, %s28, 2
        %s313 = scalar_lea.vmem %s2, %s312
        %s314 = smul.u32 2, %s27
        %p316 = scmp.eq.s32.totalorder %s29, 0
        // Predicated region
        $region49: #{tpu_custom_call.1} parent=35 // pred_check
          %p317 = pneg %p316
        $region50: #{tpu_custom_call.1} parent=35 // pred_check_branch
          %319 = sbr.rel (%p317) target = $region52
        $region51: #{tpu_custom_call.1} parent=35 // pred_region
          %320 = vst [vmem:[%s308] sm:$0xff] 0.0
          %321 = vst [vmem:[%s308 + $0x8] sm:$0xff] 0.0
        $region52: #{tpu_custom_call.1} parent=35 // pred_fallthru
          _
        %v322 = vld [vmem:[#allocation2] sm:$0x3]
        %v323 = vld [vmem:[#allocation2 + $0x2] sm:$0x3]
        %v324 = vunpack.c.l.s8.bf16 %v322
        %v325 = vunpack.c.l.s8.bf16 %v323
        %v326 = vld [vmem:[%s269] sm:$0xff]
        %v327 = vld [vmem:[%s269 + $0x8] sm:$0xff]
        %v328 = vld [vmem:[%s269 + $0x10] sm:$0xff]
        %v329 = vld [vmem:[%s269 + $0x18] sm:$0xff]
        %v330 = vunpack.c.l.s8.bf16 %v326
        %v331 = vunpack.c.h.s8.bf16 %v326
        %v332 = vunpack.c.l.s8.bf16 %v327
        %v333 = vunpack.c.h.s8.bf16 %v327
        %v334 = vunpack.c.l.s8.bf16 %v328
        %v335 = vunpack.c.h.s8.bf16 %v328
        %v336 = vunpack.c.l.s8.bf16 %v329
        %v337 = vunpack.c.h.s8.bf16 %v329
        %v338 = vld [vmem:[%s308] sm:$0xff]
        %v339 = vld [vmem:[%s308 + $0x8] sm:$0xff]
        %v342 = vunpack.c.l.b16 %v324
        %v343 = vunpack.c.l.b16 %v325
        %v344 = vpack.c.b16 %v343, %v342
        %346 = vmatprep.subr.bf16.mxu0 0
        %347 = vmatpush1.bf16.msra.mxu0 %v337
        %348 = vmatprep.subr.bf16.mxu0 0
        %349 = vmatpush1.bf16.msra.mxu0 %v336
        %350 = vmatprep.subr.bf16.mxu0 0
        %351 = vmatpush1.bf16.msra.mxu0 %v335
        %352 = vmatprep.subr.bf16.mxu0 0
        %353 = vmatpush1.bf16.msra.mxu0 %v334
        %354 = vmatprep.subr.bf16.mxu0 0
        %355 = vmatpush1.bf16.msra.mxu0 %v333
        %356 = vmatprep.subr.bf16.mxu0 0
        %357 = vmatpush1.bf16.msra.mxu0 %v332
        %358 = vmatprep.subr.bf16.mxu0 0
        %359 = vmatpush1.bf16.msra.mxu0 %v331
        %360 = vmatprep.subr.bf16.mxu0 0
        %361 = vmatpush1.bf16.msra.mxu0 %v330
        %362 = vmatprep.subr.bf16.mxu0 0
        %363 = vmatpush2.bf16.msra.mxu0 0
        %364 = vmatprep.subr.bf16.mxu0 0
        %365 = vmatpush2.bf16.msra.mxu0 0
        %366 = vmatprep.subr.bf16.mxu0 0
        %367 = vmatpush2.bf16.msra.mxu0 0
        %368 = vmatprep.subr.bf16.mxu0 0
        %369 = vmatpush2.bf16.msra.mxu0 0
        %370 = vmatprep.subr.bf16.mxu0 0
        %371 = vmatpush2.bf16.msra.mxu0 0
        %372 = vmatprep.subr.bf16.mxu0 0
        %373 = vmatpush2.bf16.msra.mxu0 0
        %374 = vmatprep.subr.bf16.mxu0 0
        %375 = vmatpush2.bf16.msra.mxu0 0
        %376 = vmatprep.subr.bf16.mxu0 0
        %377 = vmatpush2.bf16.msra.mxu0 0
        %378 = vmatprep.mubr.bf16.mxu0 0
        %379 = vmatmul.mubr.bf16.gmra.mxu0 %v344
        %v380 = vpop.f32.mrf.mxu0
        %v381 = vadd.f32 0.0, %v380
        %v382 = vpop.f32.mrf.mxu0
        %v383 = vpop.f32.mrf.mxu0
        %v384 = vadd.f32 0.0, %v383
        %v385 = vpop.f32.mrf.mxu0
        %386 = vdwg.mxu0
        %v387 = vadd.f32 %v338, %v381
        %v388 = vadd.f32 %v339, %v384
        %389 = vst [vmem:[%s308] sm:$0xff] %v387
        %390 = vst [vmem:[%s308 + $0x8] sm:$0xff] %v388
        // Predicated region
        $region53: #{tpu_custom_call.1} parent=35 // pred_check
          %p391 = pneg %p316
        $region54: #{tpu_custom_call.1} parent=35 // pred_check_branch
          %393 = sbr.rel (%p391) target = $region56
        $region55: #{tpu_custom_call.1} parent=35 // pred_region
          %v394 = vld [vmem:[%s308] sm:$0xff]
          %v395 = vld [vmem:[%s308 + $0x8] sm:$0xff]
          %v396 = vld [vmem:[%s313] sm:$0x1]
          %v398 = vlaneseq
          %v399 = vshrl.u32 %v398, 7
          %v400 = vsub.s32 0, %v399
          %v401 = vrot.slane %v396, %v400
          %v403 = vmul.f32 %v394, %v401
          %v404 = vmul.f32 %v395, %v401
          %v405 = vld [vmem:[%s277] sm:$0x1]
          %v407 = vlaneseq
          %v408 = vshrl.u32 %v407, 7
          %v409 = vsub.s32 0, %v408
          %v410 = vrot.slane %v405, %v409
          %v412 = vadd.f32 %v403, %v410
          %v413 = vadd.f32 %v404, %v410
          %414 = vst [vmem:[%s308] sm:$0xff] %v412
          %415 = vst [vmem:[%s308 + $0x8] sm:$0xff] %v413
        $region56: #{tpu_custom_call.1} parent=35 // pred_fallthru
          _
        %s416 = sand.u32 %s159, 1
        %s417 = scalar_lea.sflag [#allocation4], %s416
        %s418 = sand.u32 %s159, 1
        %s419 = smul.addr %s418, 16
        %s420 = scalar_lea.vmem [#allocation8], %s419
        // Predicated region
        $region57: #{tpu_custom_call.1} parent=35 // pred_check
          %p421 = pneg %p169
        $region58: #{tpu_custom_call.1} parent=35 // pred_check_branch
          %423 = sbr.rel (%p421) target = $region60
        $region59: #{tpu_custom_call.1} parent=35 // pred_region
          %s424 = smul.u32 2, %s27
          %s426 = ssub.s32 256, 256
          %427 = vsyncadd %s417, %s426
          %s428 = smul.addr %s424, 3
          %s429 = sadd.s32 %s28, %s428
          %s430 = smul.addr %s429, 128
          %s431 = scalar_lea.hbm %s4, %s430
          %s432 = sshll.u32 %s420, 4
          %s433 = int_to_ptr.vmem [resolvable:$true] %s432
          %438 = dma.vmem_to_hbm [thread:$0]  %s433, 256, %s431, %s417, 128, 384, 8
        $region60: #{tpu_custom_call.1} parent=35 // pred_fallthru
          _
      $region36: #{tpu_custom_call.1} parent=5 // pred_fallthru
        _
      %p439 = scmp.le.s32.totalorder 2, %s17
      // Predicated region
      $region61: #{tpu_custom_call.1} parent=5 // pred_check
        %p440 = pneg %p439
      $region62: #{tpu_custom_call.1} parent=5 // pred_check_branch
        %442 = sbr.rel (%p440) target = $region64
      $region63: #{tpu_custom_call.1} parent=5 // pred_region
        %s443 = ssub.s32 %s17, 2
        // Predicated region
        $region65: #{tpu_custom_call.1} parent=63 // pred_check
          %p444 = pneg %p175
        $region66: #{tpu_custom_call.1} parent=63 // pred_check_branch
          %446 = sbr.rel (%p444) target = $region68
        $region67: #{tpu_custom_call.1} parent=63 // pred_region
          %s447 = sand.u32 %s160, 1
          %s448 = scalar_lea.sflag [#allocation4], %s447
          %s449 = sand.u32 %s160, 1
          %s450 = smul.addr %s449, 16
          %s451 = scalar_lea.vmem [#allocation8], %s450
          %452 = dma.done %s448, 256
        $region68: #{tpu_custom_call.1} parent=63 // pred_fallthru
          _
      $region64: #{tpu_custom_call.1} parent=5 // pred_fallthru
        _
    $region6: #{tpu_custom_call.1} parent=1 // loop_footer
      %s21 = sadd.s32 1, %s17
    $region7: #{tpu_custom_call.1} parent=1 // loop_footer_branch
      %16 = sbr.rel target = $region3
    $region8: #{tpu_custom_call.1} parent=1 // loop_exit
      _
    %453 = vsyncpa [#allocation3], 1
    %s454 = scalar_lea.sflag [#allocation3], 1
    %455 = vsyncpa %s454, 1
    %456 = vsyncpa [#allocation6], 1
    %s457 = scalar_lea.sflag [#allocation6], 1
    %458 = vsyncpa %s457, 1
    %459 = vsyncpa [#allocation4], 1
    %s460 = scalar_lea.sflag [#allocation4], 1
    %461 = vsyncpa %s460, 1

</llo_original>
